<compile_context>
chip_gen: v7x
topology: tpu7x:2x2x1
jax: 0.10.0
libtpu: 0.0.40
codegen_flags: <defaults>
</compile_context>

<pallas_src>
import jax
import jax.numpy as jnp
from jax.experimental import pallas as pl
from jax.experimental.pallas import tpu as pltpu

N_EMBD = 96
HEAD_SIZE = 32
BLOCK_SIZE = 256


# -----------------------------------------------------------------------------
# Kernel 1: fused QKV projection.
#   x tile (TM, C) @ W_qkv (C, 3H) -> q (TM, H), k^T (H, TM), v (TM, H)
# K is written transposed so the attention kernel sees keys on lanes.
# -----------------------------------------------------------------------------
def qkv_proj_kernel(x_ref, w_ref, q_ref, kt_ref, v_ref):
    h = q_ref.shape[-1]
    qkv = jnp.dot(x_ref[...], w_ref[...], preferred_element_type=jnp.float32)
    q_ref[...] = qkv[:, :h].astype(q_ref.dtype)
    kt_ref[...] = qkv[:, h:2 * h].T.astype(kt_ref.dtype)     # (H, TM)
    v_ref[...] = qkv[:, 2 * h:].astype(v_ref.dtype)


# -----------------------------------------------------------------------------
# Kernel 2: flash-style additive attention with online softmax.
#   grid = (B, num_q_tiles, num_k_tiles), key-tile axis is the reduction.
#   e[i, j] = sum_d tanh(q[i, d] + k[j, d])   (key axis on lanes)
#   out     = softmax(e, axis=-1) @ v
# -----------------------------------------------------------------------------
def attn_kernel(q_ref, kt_ref, v_ref, o_ref, m_ref, l_ref, acc_ref):
    ki = pl.program_id(2)

    @pl.when(ki == 0)
    def _():
        m_ref[...] = jnp.full(m_ref.shape, -jnp.inf, jnp.float32)
        l_ref[...] = jnp.zeros(l_ref.shape, jnp.float32)
        acc_ref[...] = jnp.zeros(acc_ref.shape, jnp.float32)

    q = q_ref[...]            # (tq, H)
    kt = kt_ref[...]          # (H, tk)  -- keys on lanes
    v = v_ref[...]            # (tk, H)
    h = q.shape[-1]
    tq, tk = q.shape[0], kt.shape[-1]

    # Additive scores, keys lane-dense; accumulate over d with a fully
    # unrolled loop (H = 32) so the H reduction is a free VPU add and the
    # (tq, tk, H) broadcast tensor is never materialized.
    # TODO(synk): on v6e/v7x the tanh operands could be bf16 for ~2x EUP
    # throughput; kept f32 so the identical kernel also runs on v5e.
    e = jnp.zeros((tq, tk), jnp.float32)
    for d in range(h):
        e = e + jnp.tanh(q[:, d:d + 1] + kt[d:d + 1, :])

    # Online (flash) softmax update across key tiles.
    m_prev = m_ref[...]
    m_new = jnp.maximum(m_prev, jnp.max(e, axis=-1, keepdims=True))
    alpha = jnp.exp(m_prev - m_new)
    p = jnp.exp(e - m_new)
    l_ref[...] = alpha * l_ref[...] + jnp.sum(p, axis=-1, keepdims=True)
    acc_ref[...] = alpha * acc_ref[...] + jnp.dot(
        p, v, preferred_element_type=jnp.float32)
    m_ref[...] = m_new

    @pl.when(ki == pl.num_programs(2) - 1)
    def _():
        o_ref[...] = (acc_ref[...] *
                      pl.reciprocal(l_ref[...], approx=True)).astype(o_ref.dtype)


def head_forward(x, wq, wk, wv, *, q_tile=128, k_tile=128, proj_tile=256):
    B, T, C = x.shape
    H = wq.shape[1]

    tm = min(proj_tile, T)
    tq = min(q_tile, T)
    tk = min(k_tile, T)
    assert T % tm == 0 and T % tq == 0 and T % tk == 0, "T must tile evenly"

    # Fuse the three projection weights: one (C, 3H) matmul instead of three.
    w_qkv = jnp.concatenate([wq, wk, wv], axis=1)

    q, kt, v = pl.pallas_call(
        qkv_proj_kernel,
        out_shape=(
            jax.ShapeDtypeStruct((B, T, H), x.dtype),
            jax.ShapeDtypeStruct((B, H, T), x.dtype),   # K stored transposed
            jax.ShapeDtypeStruct((B, T, H), x.dtype),
        ),
        grid=(B, T // tm),
        in_specs=[
            pl.BlockSpec((pl.Squeezed(), tm, C), lambda b, m: (b, m, 0)),
            pl.BlockSpec((C, 3 * H), lambda b, m: (0, 0)),   # grid-invariant
        ],
        out_specs=(
            pl.BlockSpec((pl.Squeezed(), tm, H), lambda b, m: (b, m, 0)),
            pl.BlockSpec((pl.Squeezed(), H, tm), lambda b, m: (b, 0, m)),
            pl.BlockSpec((pl.Squeezed(), tm, H), lambda b, m: (b, m, 0)),
        ),
        compiler_params=pltpu.CompilerParams(
            dimension_semantics=("parallel", "parallel")),
    )(x, w_qkv)

    return pl.pallas_call(
        attn_kernel,
        out_shape=jax.ShapeDtypeStruct((B, T, H), x.dtype),
        grid=(B, T // tq, T // tk),
        in_specs=[
            pl.BlockSpec((pl.Squeezed(), tq, H), lambda b, qi, ki: (b, qi, 0)),
            pl.BlockSpec((pl.Squeezed(), H, tk), lambda b, qi, ki: (b, 0, ki)),
            pl.BlockSpec((pl.Squeezed(), tk, H), lambda b, qi, ki: (b, ki, 0)),
        ],
        out_specs=pl.BlockSpec((pl.Squeezed(), tq, H),
                               lambda b, qi, ki: (b, qi, 0)),
        scratch_shapes=[
            pltpu.VMEM((tq, 1), jnp.float32),    # running max  m
            pltpu.VMEM((tq, 1), jnp.float32),    # running sum  l
            pltpu.VMEM((tq, H), jnp.float32),    # output accumulator
        ],
        compiler_params=pltpu.CompilerParams(
            dimension_semantics=("parallel", "parallel", "arbitrary")),
    )(q, kt, v)


def reference_forward(x, wq, wk, wv):
    q = x @ wq
    k = x @ wk
    v = x @ wv
    e = jnp.sum(jnp.tanh(q[:, :, None, :] + k[:, None, :, :]), axis=-1)
    a = jax.nn.softmax(e, axis=-1)
    return jnp.einsum("bij,bjh->bih", a, v)


if __name__ == "__main__":
    B, T, C, H = 2, BLOCK_SIZE, N_EMBD, HEAD_SIZE   # (2, 256, 96), head_size=32

    key = jax.random.PRNGKey(0)
    kx, kq, kk, kv = jax.random.split(key, 4)

    x = jax.random.normal(kx, (B, T, C), dtype=jnp.float32)

    # Deterministic init mimicking nn.Linear's uniform(-1/sqrt(C), 1/sqrt(C)).
    bound = 1.0 / (C ** 0.5)
    wq = jax.random.uniform(kq, (C, H), jnp.float32, -bound, bound)
    wk = jax.random.uniform(kk, (C, H), jnp.float32, -bound, bound)
    wv = jax.random.uniform(kv, (C, H), jnp.float32, -bound, bound)

    out = jax.block_until_ready(head_forward(x, wq, wk, wv))

    ref = reference_forward(x, wq, wk, wv)
    assert out.shape == (B, T, H)
    assert jnp.allclose(out, ref, atol=1e-2, rtol=1e-2)

    print("KERNEL_OK")
</pallas_src>

<mosaic_0001>
module attributes {stable_mosaic.version = 11 : i64} {
  func.func @qkv_proj_kernel(%arg0: i32, %arg1: i32, %arg2: memref<1x256x96xf32, #tpu.memory_space<vmem>>, %arg3: memref<96x96xf32, #tpu.memory_space<vmem>>, %arg4: memref<1x256x32xf32, #tpu.memory_space<vmem>>, %arg5: memref<1x32x256xf32, #tpu.memory_space<vmem>>, %arg6: memref<1x256x32xf32, #tpu.memory_space<vmem>>) attributes {dimension_semantics = [#tpu.dimension_semantics<parallel>, #tpu.dimension_semantics<parallel>], iteration_bounds = array<i64: 2, 1>, scalar_prefetch = 0 : i64, scratch_operands = 0 : i64, tpu.core_type = #tpu.core_type<tc>, window_params = [{transform_indices = @transform_0, window_bounds = array<i64: 1, 256, 96>}, {pipeline_mode = #tpu.pipeline_mode<synchronous>, transform_indices = @transform_1, window_bounds = array<i64: 96, 96>}, {transform_indices = @transform_2, window_bounds = array<i64: 1, 256, 32>}, {transform_indices = @transform_3, window_bounds = array<i64: 1, 32, 256>}, {transform_indices = @transform_4, window_bounds = array<i64: 1, 256, 32>}]} {
    %c0 = arith.constant 0 : index
    %c0_0 = arith.constant 0 : index
    %c0_1 = arith.constant 0 : index
    %0 = vector.load %arg2[%c0, %c0_0, %c0_1] : memref<1x256x96xf32, #tpu.memory_space<vmem>>, vector<1x256x96xf32>
    %1 = vector.shape_cast %0 : vector<1x256x96xf32> to vector<256x96xf32>
    %c0_2 = arith.constant 0 : index
    %c0_3 = arith.constant 0 : index
    %2 = vector.load %arg3[%c0_2, %c0_3] : memref<96x96xf32, #tpu.memory_space<vmem>>, vector<96x96xf32>
    %cst = arith.constant dense<0.000000e+00> : vector<256x96xf32>
    %3 = tpu.matmul %1, %2, %cst {dimension_numbers = #tpu.dot_dimension_numbers<[1], [0], [0], [1], [0, 0, 1, 1], [], []>} : vector<256x96xf32>, vector<96x96xf32>, vector<256x96xf32> -> vector<256x96xf32>
    %4 = vector.extract_strided_slice %3 {offsets = [0, 0], sizes = [256, 32], strides = [1, 1]} : vector<256x96xf32> to vector<256x32xf32>
    %c0_4 = arith.constant 0 : index
    %c0_5 = arith.constant 0 : index
    %c0_6 = arith.constant 0 : index
    %5 = vector.load %arg4[%c0_4, %c0_5, %c0_6] : memref<1x256x32xf32, #tpu.memory_space<vmem>>, vector<1x256x32xf32>
    %6 = vector.shape_cast %5 : vector<1x256x32xf32> to vector<256x32xf32>
    %7 = vector.shape_cast %4 : vector<256x32xf32> to vector<1x256x32xf32>
    tpu.vector_store %arg4[%c0_4, %c0_5, %c0_6], %7 {strides = array<i32>} : memref<1x256x32xf32, #tpu.memory_space<vmem>>, vector<1x256x32xf32>,
    %8 = vector.extract_strided_slice %3 {offsets = [0, 32], sizes = [256, 32], strides = [1, 1]} : vector<256x96xf32> to vector<256x32xf32>
    %9 = tpu.transpose %8, [1, 0] : vector<256x32xf32> -> vector<32x256xf32>
    %c0_7 = arith.constant 0 : index
    %c0_8 = arith.constant 0 : index
    %c0_9 = arith.constant 0 : index
    %10 = vector.load %arg5[%c0_7, %c0_8, %c0_9] : memref<1x32x256xf32, #tpu.memory_space<vmem>>, vector<1x32x256xf32>
    %11 = vector.shape_cast %10 : vector<1x32x256xf32> to vector<32x256xf32>
    %12 = vector.shape_cast %9 : vector<32x256xf32> to vector<1x32x256xf32>
    tpu.vector_store %arg5[%c0_7, %c0_8, %c0_9], %12 {strides = array<i32>} : memref<1x32x256xf32, #tpu.memory_space<vmem>>, vector<1x32x256xf32>,
    %13 = vector.extract_strided_slice %3 {offsets = [0, 64], sizes = [256, 32], strides = [1, 1]} : vector<256x96xf32> to vector<256x32xf32>
    %c0_10 = arith.constant 0 : index
    %c0_11 = arith.constant 0 : index
    %c0_12 = arith.constant 0 : index
    %14 = vector.load %arg6[%c0_10, %c0_11, %c0_12] : memref<1x256x32xf32, #tpu.memory_space<vmem>>, vector<1x256x32xf32>
    %15 = vector.shape_cast %14 : vector<1x256x32xf32> to vector<256x32xf32>
    %16 = vector.shape_cast %13 : vector<256x32xf32> to vector<1x256x32xf32>
    tpu.vector_store %arg6[%c0_10, %c0_11, %c0_12], %16 {strides = array<i32>} : memref<1x256x32xf32, #tpu.memory_space<vmem>>, vector<1x256x32xf32>,
    return
  }
  func.func @transform_0(%arg0: i32, %arg1: i32) -> (i32, i32, i32) {
    %c0_i32 = arith.constant 0 : i32
    %c0_i32_0 = arith.constant 0 : i32
    return %arg0, %arg1, %c0_i32 : i32, i32, i32
  }
  func.func @transform_1(%arg0: i32, %arg1: i32) -> (i32, i32) {
    %c0_i32 = arith.constant 0 : i32
    %c0_i32_0 = arith.constant 0 : i32
    %c0_i32_1 = arith.constant 0 : i32
    return %c0_i32, %c0_i32_0 : i32, i32
  }
  func.func @transform_2(%arg0: i32, %arg1: i32) -> (i32, i32, i32) {
    %c0_i32 = arith.constant 0 : i32
    %c0_i32_0 = arith.constant 0 : i32
    return %arg0, %arg1, %c0_i32 : i32, i32, i32
  }
  func.func @transform_3(%arg0: i32, %arg1: i32) -> (i32, i32, i32) {
    %c0_i32 = arith.constant 0 : i32
    %c0_i32_0 = arith.constant 0 : i32
    return %arg0, %c0_i32, %arg1 : i32, i32, i32
  }
  func.func @transform_4(%arg0: i32, %arg1: i32) -> (i32, i32, i32) {
    %c0_i32 = arith.constant 0 : i32
    %c0_i32_0 = arith.constant 0 : i32
    return %arg0, %arg1, %c0_i32 : i32, i32, i32
  }
}

</mosaic_0001>

<llo_original>
// kernel: tpu_custom_call.1
$region0: #{tpu_custom_call.1}
  #allocation0 [shape = 'u32[]', space=smem, size = 0x4, offset = 0x4, fixed_abs, tag = 'smem constant byte address 0x4 - core index']
  #allocation1 [shape = 'u32[144,128]{1,0:T(1,128)}', space=vmem, size = 0x12000, scoped, tag = 'internal scratch']
  %s0 = inlined_call_operand.vmem [shape: f32[2,256,96], index: 0, kind: input, shape index: {}]
  %s1 = inlined_call_operand.vmem [shape: f32[96,96], index: 1, kind: input, shape index: {}]
  %s2 = inlined_call_operand.vmem [shape: f32[2,256,32], index: 2, kind: output, shape index: {0}]
  %s3 = inlined_call_operand.hbm [shape: f32[2,32,256], index: 3, kind: output, shape index: {1}]
  %s4 = inlined_call_operand.vmem [shape: f32[2,256,32], index: 4, kind: output, shape index: {2}]
  %5 = xla_tuple %s2, %s3, %s4
  %s6 = sld [smem:[#allocation0]]
  $region57: #{tpu_custom_call.1} parent=0
    _
  %s8 = ssub.s32 1, %s6
  %s9 = scalar_select 0, %s8, %s6
  $region1: #{tpu_custom_call.1} parent=0
    #allocation2 [shape = 'u8[65536]{0}', space=vmem, size = 0x10000, scoped, tag = 'output window, operand 1']
    #allocation3 [shape = 's32[2]{0}', space=sflag, size = 0x8, scoped, tag = 'scoped memory for tpu_custom_call.1']
    %10 = vsyncpa [#allocation3], 0
    %s11 = scalar_lea.sflag [#allocation3], 1
    %12 = vsyncpa %s11, 0
    loop: start=0, step=1, limit=4
    $region2: #{tpu_custom_call.1} parent=1 // loop_pre_header
      _
    $region3: #{tpu_custom_call.1} parent=1 // loop_header
      %s14 = sphi 0, %s18
      %p15 = scmp.ge.s32.totalorder %s14, 4
      %s21 = sphi 0, %s33
      %s22 = sphi 0, %s29
      %s23 = sphi 0, %s21
      %s24 = sphi 0, %s22
      %s25 = sphi 0, %s23
      %s26 = sphi 0, %s24
      %s38 = sphi 0, %s40
      %s41 = sphi 0, %s38
      %s42 = sphi 0, %s41
      %s58 = sphi 0, %s42
      %s62 = sphi 0, %s62
      %s64 = sphi 0, %s62
      %s65 = sphi 0, %s64
      %s79 = sphi 0, %s65
      %s87 = sphi 0, %s89
      %s90 = sphi 0, %s87
      %s91 = sphi 0, %s90
      %s107 = sphi 0, %s91
      %s115 = sphi 0, %s117
      %s118 = sphi 0, %s115
      %s119 = sphi 0, %s118
      %s135 = sphi 0, %s119
      %s143 = sphi 0, %s145
      %s146 = sphi 0, %s143
      %s147 = sphi 0, %s146
      %s163 = sphi 0, %s147
    $region4: #{tpu_custom_call.1} parent=1 // loop_header_branch
      %17 = sbr.rel (%p15) target = $region8
    $region5: #{tpu_custom_call.1} parent=1 // loop_body
      %s19 = ssub.s32 %s14, 1
      %s20 = ssub.s32 %s14, 2
      %s27 = sadd.s32 1, %s22
      %p28 = scmp.ge.s32.totalorder %s27, 1
      %s29 = scalar_select %p28, 0, %s27
      %s30 = sadd.s32 1, %s21
      %s31 = scalar_select %p28, %s30, %s21
      %p32 = scmp.ge.s32.totalorder %s31, 2
      %s33 = scalar_select %p32, 0, %s31
      %s34 = ssub.s32 %s21, %s33
      %s35 = ssub.s32 %s22, %s29
      %s36 = sor.u32 %s34, %s35
      %p37 = scmp.eq.s32.totalorder %s36, 0
      %s39 = sadd.s32 %s38, 1
      %s40 = scalar_select %p37, %s38, %s39
      %p43 = pneg %p37
      %p44 = scmp.eq.s32.totalorder %s14, 1
      %p45 = por %p43, %p44
      %p46 = scmp.ne.s32.totalorder %s38, %s41
      %p47 = scmp.eq.s32.totalorder %s14, 0
      %p48 = por %p46, %p47
      %p49 = scmp.ne.s32.totalorder %s38, %s41
      %p50 = scmp.eq.s32.totalorder %s19, 1
      %p51 = por %p49, %p50
      %p52 = scmp.ne.s32.totalorder %s41, %s42
      %p53 = scmp.eq.s32.totalorder %s19, 0
      %p54 = por %p52, %p53
      %p55 = scmp.ne.s32.totalorder %s41, %s42
      %p56 = scmp.eq.s32.totalorder %s20, 1
      %p57 = por %p55, %p56
      %p59 = scmp.ne.s32.totalorder %s42, %s58
      %p60 = scmp.eq.s32.totalorder %s20, 0
      %p61 = por %p59, %p60
      %s63 = sadd.s32 %s62, 1
      %p66 = scmp.eq.s32.totalorder %s14, 1
      %p67 = scmp.ne.s32.totalorder %s62, %s64
      %p68 = scmp.eq.s32.totalorder %s14, 0
      %p69 = por %p67, %p68
      %p70 = scmp.ne.s32.totalorder %s62, %s64
      %p71 = scmp.eq.s32.totalorder %s19, 1
      %p72 = por %p70, %p71
      %p73 = scmp.ne.s32.totalorder %s64, %s65
      %p74 = scmp.eq.s32.totalorder %s19, 0
      %p75 = por %p73, %p74
      %p76 = scmp.ne.s32.totalorder %s64, %s65
      %p77 = scmp.eq.s32.totalorder %s20, 1
      %p78 = por %p76, %p77
      %p80 = scmp.ne.s32.totalorder %s65, %s79
      %p81 = scmp.eq.s32.totalorder %s20, 0
      %p82 = por %p80, %p81
      %s83 = ssub.s32 %s21, %s33
      %s84 = ssub.s32 %s22, %s29
      %s85 = sor.u32 %s83, %s84
      %p86 = scmp.eq.s32.totalorder %s85, 0
      %s88 = sadd.s32 %s87, 1
      %s89 = scalar_select %p86, %s87, %s88
      %p92 = pneg %p86
      %p93 = scmp.eq.s32.totalorder %s14, 1
      %p94 = por %p92, %p93
      %p95 = scmp.ne.s32.totalorder %s87, %s90
      %p96 = scmp.eq.s32.totalorder %s14, 0
      %p97 = por %p95, %p96
      %p98 = scmp.ne.s32.totalorder %s87, %s90
      %p99 = scmp.eq.s32.totalorder %s19, 1
      %p100 = por %p98, %p99
      %p101 = scmp.ne.s32.totalorder %s90, %s91
      %p102 = scmp.eq.s32.totalorder %s19, 0
      %p103 = por %p101, %p102
      %p104 = scmp.ne.s32.totalorder %s90, %s91
      %p105 = scmp.eq.s32.totalorder %s20, 1
      %p106 = por %p104, %p105
      %p108 = scmp.ne.s32.totalorder %s91, %s107
      %p109 = scmp.eq.s32.totalorder %s20, 0
      %p110 = por %p108, %p109
      %s111 = ssub.s32 %s21, %s33
      %s112 = ssub.s32 %s22, %s29
      %s113 = sor.u32 %s111, %s112
      %p114 = scmp.eq.s32.totalorder %s113, 0
      %s116 = sadd.s32 %s115, 1
      %s117 = scalar_select %p114, %s115, %s116
      %p120 = pneg %p114
      %p121 = scmp.eq.s32.totalorder %s14, 1
      %p122 = por %p120, %p121
      %p123 = scmp.ne.s32.totalorder %s115, %s118
      %p124 = scmp.eq.s32.totalorder %s14, 0
      %p125 = por %p123, %p124
      %p126 = scmp.ne.s32.totalorder %s115, %s118
      %p127 = scmp.eq.s32.totalorder %s19, 1
      %p128 = por %p126, %p127
      %p129 = scmp.ne.s32.totalorder %s118, %s119
      %p130 = scmp.eq.s32.totalorder %s19, 0
      %p131 = por %p129, %p130
      %p132 = scmp.ne.s32.totalorder %s118, %s119
      %p133 = scmp.eq.s32.totalorder %s20, 1
      %p134 = por %p132, %p133
      %p136 = scmp.ne.s32.totalorder %s119, %s135
      %p137 = scmp.eq.s32.totalorder %s20, 0
      %p138 = por %p136, %p137
      %s139 = ssub.s32 %s21, %s33
      %s140 = ssub.s32 %s22, %s29
      %s141 = sor.u32 %s139, %s140
      %p142 = scmp.eq.s32.totalorder %s141, 0
      %s144 = sadd.s32 %s143, 1
      %s145 = scalar_select %p142, %s143, %s144
      %p148 = pneg %p142
      %p149 = scmp.eq.s32.totalorder %s14, 1
      %p150 = por %p148, %p149
      %p151 = scmp.ne.s32.totalorder %s143, %s146
      %p152 = scmp.eq.s32.totalorder %s14, 0
      %p153 = por %p151, %p152
      %p154 = scmp.ne.s32.totalorder %s143, %s146
      %p155 = scmp.eq.s32.totalorder %s19, 1
      %p156 = por %p154, %p155
      %p157 = scmp.ne.s32.totalorder %s146, %s147
      %p158 = scmp.eq.s32.totalorder %s19, 0
      %p159 = por %p157, %p158
      %p160 = scmp.ne.s32.totalorder %s146, %s147
      %p161 = scmp.eq.s32.totalorder %s20, 1
      %p162 = por %p160, %p161
      %p164 = scmp.ne.s32.totalorder %s147, %s163
      %p165 = scmp.eq.s32.totalorder %s20, 0
      %p166 = por %p164, %p165
      %p167 = scmp.le.s32.totalorder 1, %s14
      %p168 = scmp.lt.s32.totalorder %s14, 3
      %p169 = pnand %p167, %p168
      %p170 = pneg %p169
      // Predicated region
      $region9: #{tpu_custom_call.1} parent=5 // pred_check
        _
      $region10: #{tpu_custom_call.1} parent=5 // pred_check_branch
        %172 = sbr.rel (%p169) target = $region12
      $region11: #{tpu_custom_call.1} parent=5 // pred_region
        %s173 = ssub.s32 %s14, 1
        // Predicated region
        $region13: #{tpu_custom_call.1} parent=11 // pred_check
          %p174 = pneg %p75
        $region14: #{tpu_custom_call.1} parent=11 // pred_check_branch
          %176 = sbr.rel (%p174) target = $region16
        $region15: #{tpu_custom_call.1} parent=11 // pred_region
          _
        $region16: #{tpu_custom_call.1} parent=11 // pred_fallthru
          _
      $region12: #{tpu_custom_call.1} parent=5 // pred_fallthru
        _
      %p177 = scmp.lt.s32.totalorder %s14, 2
      // Predicated region
      $region17: #{tpu_custom_call.1} parent=5 // pred_check
        %p178 = pneg %p177
      $region18: #{tpu_custom_call.1} parent=5 // pred_check_branch
        %180 = sbr.rel (%p178) target = $region20
      $region19: #{tpu_custom_call.1} parent=5 // pred_region
        // Predicated region
        $region21: #{tpu_custom_call.1} parent=19 // pred_check
          %p181 = pneg %p48
        $region22: #{tpu_custom_call.1} parent=19 // pred_check_branch
          %183 = sbr.rel (%p181) target = $region24
        $region23: #{tpu_custom_call.1} parent=19 // pred_region
          %s184 = smul.u32 32, %s22
          %p185 = scmp.lt.s32.totalorder %s21, 1
          %s186 = scalar_select %p185, %s21, 1
          %p187 = scmp.lt.s32.totalorder %s184, 31
          %s188 = scalar_select %p187, %s184, 31
          %s189 = smul.addr %s186, 32
          %s190 = sadd.s32 %s188, %s189
          %s191 = smul.addr %s190, 8
          %s192 = scalar_lea.vmem %s0, %s191
          %s193 = smul.u32 32, %s22
        $region24: #{tpu_custom_call.1} parent=19 // pred_fallthru
          _
      $region20: #{tpu_custom_call.1} parent=5 // pred_fallthru
        _
      %p194 = scmp.le.s32.totalorder 1, %s14
      %p195 = scmp.lt.s32.totalorder %s14, 3
      %p196 = pnand %p194, %p195
      %p197 = pneg %p196
      // Predicated region
      $region25: #{tpu_custom_call.1} parent=5 // pred_check
        _
      $region26: #{tpu_custom_call.1} parent=5 // pred_check_branch
        %199 = sbr.rel (%p196) target = $region28
      $region27: #{tpu_custom_call.1} parent=5 // pred_region
        %s200 = ssub.s32 %s14, 1
        %s201 = smul.u32 32, %s24
        %p202 = scmp.lt.s32.totalorder %s23, 1
        %s203 = scalar_select %p202, %s23, 1
        %p204 = scmp.lt.s32.totalorder %s201, 31
        %s205 = scalar_select %p204, %s201, 31
        %s206 = smul.addr %s203, 32
        %s207 = sadd.s32 %s205, %s206
        %s208 = smul.addr %s207, 8
        %s209 = scalar_lea.vmem %s0, %s208
        %p210 = pneg %p54
        %p211 = pneg %p51
        %p212 = pneg %p75
        %p213 = pneg %p72
        %p214 = pneg %p103
        %p215 = pneg %p100
        %s216 = smul.u32 32, %s24
        %p217 = scmp.lt.s32.totalorder %s23, 1
        %s218 = scalar_select %p217, %s23, 1
        %p219 = scmp.lt.s32.totalorder %s216, 31
        %s220 = scalar_select %p219, %s216, 31
        %s221 = smul.addr %s218, 32
        %s222 = sadd.s32 %s220, %s221
        %s223 = smul.addr %s222, 8
        %s224 = scalar_lea.vmem %s2, %s223
        %p225 = pneg %p131
        %p226 = pneg %p128
        %s227 = sand.u32 %s118, 1
        %s228 = scalar_lea.sflag [#allocation3], %s227
        %s229 = sand.u32 %s118, 1
        %s230 = smul.addr %s229, 64
        %s231 = scalar_lea.vmem [#allocation2], %s230
        %p232 = pneg %p159
        %p233 = pneg %p156
        %s234 = smul.u32 32, %s24
        %p235 = scmp.lt.s32.totalorder %s23, 1
        %s236 = scalar_select %p235, %s23, 1
        %p237 = scmp.lt.s32.totalorder %s234, 31
        %s238 = scalar_select %p237, %s234, 31
        %s239 = smul.addr %s236, 32
        %s240 = sadd.s32 %s238, %s239
        %s241 = smul.addr %s240, 8
        %s242 = scalar_lea.vmem %s4, %s241
        %s243 = smul.u32 32, %s24
        %p244 = scmp.lt.s32.totalorder %s23, 1
        %s245 = scalar_select %p244, %s23, 1
        %p246 = scmp.lt.s32.totalorder %s243, 31
        %s247 = scalar_select %p246, %s243, 31
        %s248 = smul.addr %s245, 32
        %s249 = sadd.s32 %s247, %s248
        %s250 = smul.addr %s249, 8
        %s251 = scalar_lea.vmem %s0, %s250
        %s252 = smul.u32 32, %s24
        %s253 = smul.u32 32, %s24
        %p254 = scmp.lt.s32.totalorder %s23, 1
        %s255 = scalar_select %p254, %s23, 1
        %p256 = scmp.lt.s32.totalorder %s253, 31
        %s257 = scalar_select %p256, %s253, 31
        %s258 = smul.addr %s255, 32
        %s259 = sadd.s32 %s257, %s258
        %s260 = smul.addr %s259, 8
        %s261 = scalar_lea.vmem %s2, %s260
        %s262 = smul.u32 32, %s24
        %s263 = smul.u32 2, %s24
        %s264 = smul.u32 32, %s24
        %p265 = scmp.lt.s32.totalorder %s23, 1
        %s266 = scalar_select %p265, %s23, 1
        %p267 = scmp.lt.s32.totalorder %s264, 31
        %s268 = scalar_select %p267, %s264, 31
        %s269 = smul.addr %s266, 32
        %s270 = sadd.s32 %s268, %s269
        %s271 = smul.addr %s270, 8
        %s272 = scalar_lea.vmem %s4, %s271
        %s273 = smul.u32 32, %s24
        %v274 = vld [vmem:[%s251] sm:$0xff]
        %v275 = vld [vmem:[%s251 + $0x8] sm:$0xff]
        %v276 = vld [vmem:[%s251 + $0x10] sm:$0xff]
        %v277 = vld [vmem:[%s251 + $0x18] sm:$0xff]
        %v278 = vld [vmem:[%s251 + $0x20] sm:$0xff]
        %v279 = vld [vmem:[%s251 + $0x28] sm:$0xff]
        %v280 = vld [vmem:[%s251 + $0x30] sm:$0xff]
        %v281 = vld [vmem:[%s251 + $0x38] sm:$0xff]
        %v282 = vld [vmem:[%s251 + $0x40] sm:$0xff]
        %v283 = vld [vmem:[%s251 + $0x48] sm:$0xff]
        %v284 = vld [vmem:[%s251 + $0x50] sm:$0xff]
        %v285 = vld [vmem:[%s251 + $0x58] sm:$0xff]
        %v286 = vld [vmem:[%s251 + $0x60] sm:$0xff]
        %v287 = vld [vmem:[%s251 + $0x68] sm:$0xff]
        %v288 = vld [vmem:[%s251 + $0x70] sm:$0xff]
        %v289 = vld [vmem:[%s251 + $0x78] sm:$0xff]
        %v290 = vld [vmem:[%s251 + $0x80] sm:$0xff]
        %v291 = vld [vmem:[%s251 + $0x88] sm:$0xff]
        %v292 = vld [vmem:[%s251 + $0x90] sm:$0xff]
        %v293 = vld [vmem:[%s251 + $0x98] sm:$0xff]
        %v294 = vld [vmem:[%s251 + $0xa0] sm:$0xff]
        %v295 = vld [vmem:[%s251 + $0xa8] sm:$0xff]
        %v296 = vld [vmem:[%s251 + $0xb0] sm:$0xff]
        %v297 = vld [vmem:[%s251 + $0xb8] sm:$0xff]
        %v298 = vld [vmem:[%s251 + $0xc0] sm:$0xff]
        %v299 = vld [vmem:[%s251 + $0xc8] sm:$0xff]
        %v300 = vld [vmem:[%s251 + $0xd0] sm:$0xff]
        %v301 = vld [vmem:[%s251 + $0xd8] sm:$0xff]
        %v302 = vld [vmem:[%s251 + $0xe0] sm:$0xff]
        %v303 = vld [vmem:[%s251 + $0xe8] sm:$0xff]
        %v304 = vld [vmem:[%s251 + $0xf0] sm:$0xff]
        %v305 = vld [vmem:[%s251 + $0xf8] sm:$0xff]
        %v306 = vld [vmem:[%s1] sm:$0xff]
        %v307 = vld [vmem:[%s1 + $0x8] sm:$0xff]
        %v308 = vld [vmem:[%s1 + $0x10] sm:$0xff]
        %v309 = vld [vmem:[%s1 + $0x18] sm:$0xff]
        %v310 = vld [vmem:[%s1 + $0x20] sm:$0xff]
        %v311 = vld [vmem:[%s1 + $0x28] sm:$0xff]
        %v312 = vld [vmem:[%s1 + $0x30] sm:$0xff]
        %v313 = vld [vmem:[%s1 + $0x38] sm:$0xff]
        %v314 = vld [vmem:[%s1 + $0x40] sm:$0xff]
        %v315 = vld [vmem:[%s1 + $0x48] sm:$0xff]
        %v316 = vld [vmem:[%s1 + $0x50] sm:$0xff]
        %v317 = vld [vmem:[%s1 + $0x58] sm:$0xff]
        %vm318 = vcmask 785408
        %v320 = vsel %vm318, %v274, 0
        %v323 = vsel %vm318, %v275, 0
        %v326 = vsel %vm318, %v276, 0
        %v329 = vsel %vm318, %v277, 0
        %v332 = vsel %vm318, %v278, 0
        %v335 = vsel %vm318, %v279, 0
        %v338 = vsel %vm318, %v280, 0
        %v341 = vsel %vm318, %v281, 0
        %v344 = vsel %vm318, %v282, 0
        %v347 = vsel %vm318, %v283, 0
        %v350 = vsel %vm318, %v284, 0
        %v353 = vsel %vm318, %v285, 0
        %v356 = vsel %vm318, %v286, 0
        %v359 = vsel %vm318, %v287, 0
        %v362 = vsel %vm318, %v288, 0
        %v365 = vsel %vm318, %v289, 0
        %v368 = vsel %vm318, %v290, 0
        %v371 = vsel %vm318, %v291, 0
        %v374 = vsel %vm318, %v292, 0
        %v377 = vsel %vm318, %v293, 0
        %v380 = vsel %vm318, %v294, 0
        %v383 = vsel %vm318, %v295, 0
        %v386 = vsel %vm318, %v296, 0
        %v389 = vsel %vm318, %v297, 0
        %v392 = vsel %vm318, %v298, 0
        %v395 = vsel %vm318, %v299, 0
        %v398 = vsel %vm318, %v300, 0
        %v401 = vsel %vm318, %v301, 0
        %v404 = vsel %vm318, %v302, 0
        %v407 = vsel %vm318, %v303, 0
        %v410 = vsel %vm318, %v304, 0
        %v413 = vsel %vm318, %v305, 0
        %415 = vmatprep.subr.mxu0 0.0
        %416 = vmatpush1.msra.mxu0 %v306
        %417 = vmatprep.subr.mxu0 0.0
        %418 = vmatpush1.msra.mxu0 %v307
        %419 = vmatprep.subr.mxu0 0.0
        %420 = vmatpush1.msra.mxu0 %v308
        %421 = vmatprep.subr.mxu0 0.0
        %422 = vmatpush1.msra.mxu0 %v309
        %423 = vmatprep.subr.mxu0 0.0
        %424 = vmatpush1.msra.mxu0 %v310
        %425 = vmatprep.subr.mxu0 0.0
        %426 = vmatpush1.msra.mxu0 %v311
        %427 = vmatprep.subr.mxu0 0.0
        %428 = vmatpush1.msra.mxu0 %v312
        %429 = vmatprep.subr.mxu0 0.0
        %430 = vmatpush1.msra.mxu0 %v313
        %431 = vmatprep.subr.mxu0 0.0
        %432 = vmatpush1.msra.mxu0 %v314
        %433 = vmatprep.subr.mxu0 0.0
        %434 = vmatpush1.msra.mxu0 %v315
        %435 = vmatprep.subr.mxu0 0.0
        %436 = vmatpush1.msra.mxu0 %v316
        %437 = vmatprep.subr.mxu0 0.0
        %438 = vmatpush1.msra.mxu0 %v317
        %439 = vmatprep.subr.mxu0 0.0
        %440 = vmatpush1.msra.mxu0 0.0
        %441 = vmatprep.subr.mxu0 0.0
        %442 = vmatpush1.msra.mxu0 0.0
        %443 = vmatprep.subr.mxu0 0.0
        %444 = vmatpush1.msra.mxu0 0.0
        %445 = vmatprep.subr.mxu0 0.0
        %446 = vmatpush1.msra.mxu0 0.0
        %447 = vmatprep.subr.mxu0 0.0
        %448 = vmatpush1.msra.mxu0 0.0
        %449 = vmatprep.subr.mxu0 0.0
        %450 = vmatpush1.msra.mxu0 0.0
        %451 = vmatprep.subr.mxu0 0.0
        %452 = vmatpush1.msra.mxu0 0.0
        %453 = vmatprep.subr.mxu0 0.0
        %454 = vmatpush1.msra.mxu0 0.0
        %455 = vmatprep.subr.mxu0 0.0
        %456 = vmatpush1.msra.mxu0 0.0
        %457 = vmatprep.subr.mxu0 0.0
        %458 = vmatpush1.msra.mxu0 0.0
        %459 = vmatprep.subr.mxu0 0.0
        %460 = vmatpush1.msra.mxu0 0.0
        %461 = vmatprep.subr.mxu0 0.0
        %462 = vmatpush1.msra.mxu0 0.0
        %463 = vmatprep.subr.mxu0 0.0
        %464 = vmatpush1.msra.mxu0 0.0
        %465 = vmatprep.subr.mxu0 0.0
        %466 = vmatpush1.msra.mxu0 0.0
        %467 = vmatprep.subr.mxu0 0.0
        %468 = vmatpush1.msra.mxu0 0.0
        %469 = vmatprep.subr.mxu0 0.0
        %470 = vmatpush1.msra.mxu0 0.0
        %471 = vmatprep.subr.mxu0 0.0
        %472 = vmatpush1.msra.mxu0 0.0
        %473 = vmatprep.subr.mxu0 0.0
        %474 = vmatpush1.msra.mxu0 0.0
        %475 = vmatprep.subr.mxu0 0.0
        %476 = vmatpush1.msra.mxu0 0.0
        %477 = vmatprep.subr.mxu0 0.0
        %478 = vmatpush1.msra.mxu0 0.0
        %479 = vmatprep.mubr.f32.mxu0 0.0
        %480 = vmatmul.mubr.f32.gmra.mrb[0].mxu0 %v320
        %v481 = vpop.f32.mrb[0].mxu0
        %v482 = vadd.f32 0.0, %v481
        %v483 = vpop.f32.mrb[0].mxu0
        %484 = vmatprep.mubr.f32.mxu0 0.0
        %485 = vmatmul.mubr.f32.gmra.mrb[0].mxu0 %v323
        %v486 = vpop.f32.mrb[0].mxu0
        %v487 = vadd.f32 0.0, %v486
        %v488 = vpop.f32.mrb[0].mxu0
        %489 = vmatprep.mubr.f32.mxu0 0.0
        %490 = vmatmul.mubr.f32.gmra.mrb[0].mxu0 %v326
        %v491 = vpop.f32.mrb[0].mxu0
        %v492 = vadd.f32 0.0, %v491
        %v493 = vpop.f32.mrb[0].mxu0
        %494 = vmatprep.mubr.f32.mxu0 0.0
        %495 = vmatmul.mubr.f32.gmra.mrb[0].mxu0 %v329
        %v496 = vpop.f32.mrb[0].mxu0
        %v497 = vadd.f32 0.0, %v496
        %v498 = vpop.f32.mrb[0].mxu0
        %499 = vmatprep.mubr.f32.mxu0 0.0
        %500 = vmatmul.mubr.f32.gmra.mrb[0].mxu0 %v332
        %v501 = vpop.f32.mrb[0].mxu0
        %v502 = vadd.f32 0.0, %v501
        %v503 = vpop.f32.mrb[0].mxu0
        %504 = vmatprep.mubr.f32.mxu0 0.0
        %505 = vmatmul.mubr.f32.gmra.mrb[0].mxu0 %v335
        %v506 = vpop.f32.mrb[0].mxu0
        %v507 = vadd.f32 0.0, %v506
        %v508 = vpop.f32.mrb[0].mxu0
        %509 = vmatprep.mubr.f32.mxu0 0.0
        %510 = vmatmul.mubr.f32.gmra.mrb[0].mxu0 %v338
        %v511 = vpop.f32.mrb[0].mxu0
        %v512 = vadd.f32 0.0, %v511
        %v513 = vpop.f32.mrb[0].mxu0
        %514 = vmatprep.mubr.f32.mxu0 0.0
        %515 = vmatmul.mubr.f32.gmra.mrb[0].mxu0 %v341
        %v516 = vpop.f32.mrb[0].mxu0
        %v517 = vadd.f32 0.0, %v516
        %v518 = vpop.f32.mrb[0].mxu0
        %519 = vmatprep.mubr.f32.mxu0 0.0
        %520 = vmatmul.mubr.f32.gmra.mrb[0].mxu0 %v344
        %v521 = vpop.f32.mrb[0].mxu0
        %v522 = vadd.f32 0.0, %v521
        %v523 = vpop.f32.mrb[0].mxu0
        %524 = vmatprep.mubr.f32.mxu0 0.0
        %525 = vmatmul.mubr.f32.gmra.mrb[0].mxu0 %v347
        %v526 = vpop.f32.mrb[0].mxu0
        %v527 = vadd.f32 0.0, %v526
        %v528 = vpop.f32.mrb[0].mxu0
        %529 = vmatprep.mubr.f32.mxu0 0.0
        %530 = vmatmul.mubr.f32.gmra.mrb[0].mxu0 %v350
        %v531 = vpop.f32.mrb[0].mxu0
        %v532 = vadd.f32 0.0, %v531
        %v533 = vpop.f32.mrb[0].mxu0
        %534 = vmatprep.mubr.f32.mxu0 0.0
        %535 = vmatmul.mubr.f32.gmra.mrb[0].mxu0 %v353
        %v536 = vpop.f32.mrb[0].mxu0
        %v537 = vadd.f32 0.0, %v536
        %v538 = vpop.f32.mrb[0].mxu0
        %539 = vmatprep.mubr.f32.mxu0 0.0
        %540 = vmatmul.mubr.f32.gmra.mrb[0].mxu0 %v356
        %v541 = vpop.f32.mrb[0].mxu0
        %v542 = vadd.f32 0.0, %v541
        %v543 = vpop.f32.mrb[0].mxu0
        %544 = vmatprep.mubr.f32.mxu0 0.0
        %545 = vmatmul.mubr.f32.gmra.mrb[0].mxu0 %v359
        %v546 = vpop.f32.mrb[0].mxu0
        %v547 = vadd.f32 0.0, %v546
        %v548 = vpop.f32.mrb[0].mxu0
        %549 = vmatprep.mubr.f32.mxu0 0.0
        %550 = vmatmul.mubr.f32.gmra.mrb[0].mxu0 %v362
        %v551 = vpop.f32.mrb[0].mxu0
        %v552 = vadd.f32 0.0, %v551
        %v553 = vpop.f32.mrb[0].mxu0
        %554 = vmatprep.mubr.f32.mxu0 0.0
        %555 = vmatmul.mubr.f32.gmra.mrb[0].mxu0 %v365
        %v556 = vpop.f32.mrb[0].mxu0
        %v557 = vadd.f32 0.0, %v556
        %v558 = vpop.f32.mrb[0].mxu0
        %559 = vmatprep.mubr.f32.mxu0 0.0
        %560 = vmatmul.mubr.f32.gmra.mrb[0].mxu0 %v368
        %v561 = vpop.f32.mrb[0].mxu0
        %v562 = vadd.f32 0.0, %v561
        %v563 = vpop.f32.mrb[0].mxu0
        %564 = vmatprep.mubr.f32.mxu0 0.0
        %565 = vmatmul.mubr.f32.gmra.mrb[0].mxu0 %v371
        %v566 = vpop.f32.mrb[0].mxu0
        %v567 = vadd.f32 0.0, %v566
        %v568 = vpop.f32.mrb[0].mxu0
        %569 = vmatprep.mubr.f32.mxu0 0.0
        %570 = vmatmul.mubr.f32.gmra.mrb[0].mxu0 %v374
        %v571 = vpop.f32.mrb[0].mxu0
        %v572 = vadd.f32 0.0, %v571
        %v573 = vpop.f32.mrb[0].mxu0
        %574 = vmatprep.mubr.f32.mxu0 0.0
        %575 = vmatmul.mubr.f32.gmra.mrb[0].mxu0 %v377
        %v576 = vpop.f32.mrb[0].mxu0
        %v577 = vadd.f32 0.0, %v576
        %v578 = vpop.f32.mrb[0].mxu0
        %579 = vmatprep.mubr.f32.mxu0 0.0
        %580 = vmatmul.mubr.f32.gmra.mrb[0].mxu0 %v380
        %v581 = vpop.f32.mrb[0].mxu0
        %v582 = vadd.f32 0.0, %v581
        %v583 = vpop.f32.mrb[0].mxu0
        %584 = vmatprep.mubr.f32.mxu0 0.0
        %585 = vmatmul.mubr.f32.gmra.mrb[0].mxu0 %v383
        %v586 = vpop.f32.mrb[0].mxu0
        %v587 = vadd.f32 0.0, %v586
        %v588 = vpop.f32.mrb[0].mxu0
        %589 = vmatprep.mubr.f32.mxu0 0.0
        %590 = vmatmul.mubr.f32.gmra.mrb[0].mxu0 %v386
        %v591 = vpop.f32.mrb[0].mxu0
        %v592 = vadd.f32 0.0, %v591
        %v593 = vpop.f32.mrb[0].mxu0
        %594 = vmatprep.mubr.f32.mxu0 0.0
        %595 = vmatmul.mubr.f32.gmra.mrb[0].mxu0 %v389
        %v596 = vpop.f32.mrb[0].mxu0
        %v597 = vadd.f32 0.0, %v596
        %v598 = vpop.f32.mrb[0].mxu0
        %599 = vmatprep.mubr.f32.mxu0 0.0
        %600 = vmatmul.mubr.f32.gmra.mrb[0].mxu0 %v392
        %v601 = vpop.f32.mrb[0].mxu0
        %v602 = vadd.f32 0.0, %v601
        %v603 = vpop.f32.mrb[0].mxu0
        %604 = vmatprep.mubr.f32.mxu0 0.0
        %605 = vmatmul.mubr.f32.gmra.mrb[0].mxu0 %v395
        %v606 = vpop.f32.mrb[0].mxu0
        %v607 = vadd.f32 0.0, %v606
        %v608 = vpop.f32.mrb[0].mxu0
        %609 = vmatprep.mubr.f32.mxu0 0.0
        %610 = vmatmul.mubr.f32.gmra.mrb[0].mxu0 %v398
        %v611 = vpop.f32.mrb[0].mxu0
        %v612 = vadd.f32 0.0, %v611
        %v613 = vpop.f32.mrb[0].mxu0
        %614 = vmatprep.mubr.f32.mxu0 0.0
        %615 = vmatmul.mubr.f32.gmra.mrb[0].mxu0 %v401
        %v616 = vpop.f32.mrb[0].mxu0
        %v617 = vadd.f32 0.0, %v616
        %v618 = vpop.f32.mrb[0].mxu0
        %619 = vmatprep.mubr.f32.mxu0 0.0
        %620 = vmatmul.mubr.f32.gmra.mrb[0].mxu0 %v404
        %v621 = vpop.f32.mrb[0].mxu0
        %v622 = vadd.f32 0.0, %v621
        %v623 = vpop.f32.mrb[0].mxu0
        %624 = vmatprep.mubr.f32.mxu0 0.0
        %625 = vmatmul.mubr.f32.gmra.mrb[0].mxu0 %v407
        %v626 = vpop.f32.mrb[0].mxu0
        %v627 = vadd.f32 0.0, %v626
        %v628 = vpop.f32.mrb[0].mxu0
        %629 = vmatprep.mubr.f32.mxu0 0.0
        %630 = vmatmul.mubr.f32.gmra.mrb[0].mxu0 %v410
        %v631 = vpop.f32.mrb[0].mxu0
        %v632 = vadd.f32 0.0, %v631
        %v633 = vpop.f32.mrb[0].mxu0
        %634 = vmatprep.mubr.f32.mxu0 0.0
        %635 = vmatmul.mubr.f32.gmra.mrb[0].mxu0 %v413
        %v636 = vpop.f32.mrb[0].mxu0
        %v637 = vadd.f32 0.0, %v636
        %v638 = vpop.f32.mrb[0].mxu0
        %639 = vdwg.mxu0
        %vm640 = vcmask 261120
        %641 = vst.msk [vmem:[%s261] sm:$0xff] %vm640, %v482
        %642 = vst.msk [vmem:[%s261 + $0x8] sm:$0xff] %vm640, %v487
        %643 = vst.msk [vmem:[%s261 + $0x10] sm:$0xff] %vm640, %v492
        %644 = vst.msk [vmem:[%s261 + $0x18] sm:$0xff] %vm640, %v497
        %645 = vst.msk [vmem:[%s261 + $0x20] sm:$0xff] %vm640, %v502
        %646 = vst.msk [vmem:[%s261 + $0x28] sm:$0xff] %vm640, %v507
        %647 = vst.msk [vmem:[%s261 + $0x30] sm:$0xff] %vm640, %v512
        %648 = vst.msk [vmem:[%s261 + $0x38] sm:$0xff] %vm640, %v517
        %649 = vst.msk [vmem:[%s261 + $0x40] sm:$0xff] %vm640, %v522
        %650 = vst.msk [vmem:[%s261 + $0x48] sm:$0xff] %vm640, %v527
        %651 = vst.msk [vmem:[%s261 + $0x50] sm:$0xff] %vm640, %v532
        %652 = vst.msk [vmem:[%s261 + $0x58] sm:$0xff] %vm640, %v537
        %653 = vst.msk [vmem:[%s261 + $0x60] sm:$0xff] %vm640, %v542
        %654 = vst.msk [vmem:[%s261 + $0x68] sm:$0xff] %vm640, %v547
        %655 = vst.msk [vmem:[%s261 + $0x70] sm:$0xff] %vm640, %v552
        %656 = vst.msk [vmem:[%s261 + $0x78] sm:$0xff] %vm640, %v557
        %657 = vst.msk [vmem:[%s261 + $0x80] sm:$0xff] %vm640, %v562
        %658 = vst.msk [vmem:[%s261 + $0x88] sm:$0xff] %vm640, %v567
        %659 = vst.msk [vmem:[%s261 + $0x90] sm:$0xff] %vm640, %v572
        %660 = vst.msk [vmem:[%s261 + $0x98] sm:$0xff] %vm640, %v577
        %661 = vst.msk [vmem:[%s261 + $0xa0] sm:$0xff] %vm640, %v582
        %662 = vst.msk [vmem:[%s261 + $0xa8] sm:$0xff] %vm640, %v587
        %663 = vst.msk [vmem:[%s261 + $0xb0] sm:$0xff] %vm640, %v592
        %664 = vst.msk [vmem:[%s261 + $0xb8] sm:$0xff] %vm640, %v597
        %665 = vst.msk [vmem:[%s261 + $0xc0] sm:$0xff] %vm640, %v602
        %666 = vst.msk [vmem:[%s261 + $0xc8] sm:$0xff] %vm640, %v607
        %667 = vst.msk [vmem:[%s261 + $0xd0] sm:$0xff] %vm640, %v612
        %668 = vst.msk [vmem:[%s261 + $0xd8] sm:$0xff] %vm640, %v617
        %669 = vst.msk [vmem:[%s261 + $0xe0] sm:$0xff] %vm640, %v622
        %670 = vst.msk [vmem:[%s261 + $0xe8] sm:$0xff] %vm640, %v627
        %671 = vst.msk [vmem:[%s261 + $0xf0] sm:$0xff] %vm640, %v632
        %672 = vst.msk [vmem:[%s261 + $0xf8] sm:$0xff] %vm640, %v637
        %705 = vrot.lane.b32.xlu0 %v482, 96
        %v706 = vpop.permute.xlu0 %705
        %707 = vrot.lane.b32.xlu0 %v487, 96
        %v708 = vpop.permute.xlu0 %707
        %709 = vrot.lane.b32.xlu0 %v492, 96
        %v710 = vpop.permute.xlu0 %709
        %711 = vrot.lane.b32.xlu0 %v497, 96
        %v712 = vpop.permute.xlu0 %711
        %713 = vrot.lane.b32.xlu0 %v502, 96
        %v714 = vpop.permute.xlu0 %713
        %715 = vrot.lane.b32.xlu0 %v507, 96
        %v716 = vpop.permute.xlu0 %715
        %717 = vrot.lane.b32.xlu0 %v512, 96
        %v718 = vpop.permute.xlu0 %717
        %719 = vrot.lane.b32.xlu0 %v517, 96
        %v720 = vpop.permute.xlu0 %719
        %721 = vrot.lane.b32.xlu0 %v522, 96
        %v722 = vpop.permute.xlu0 %721
        %723 = vrot.lane.b32.xlu0 %v527, 96
        %v724 = vpop.permute.xlu0 %723
        %725 = vrot.lane.b32.xlu0 %v532, 96
        %v726 = vpop.permute.xlu0 %725
        %727 = vrot.lane.b32.xlu0 %v537, 96
        %v728 = vpop.permute.xlu0 %727
        %729 = vrot.lane.b32.xlu0 %v542, 96
        %v730 = vpop.permute.xlu0 %729
        %731 = vrot.lane.b32.xlu0 %v547, 96
        %v732 = vpop.permute.xlu0 %731
        %733 = vrot.lane.b32.xlu0 %v552, 96
        %v734 = vpop.permute.xlu0 %733
        %735 = vrot.lane.b32.xlu0 %v557, 96
        %v736 = vpop.permute.xlu0 %735
        %737 = vrot.lane.b32.xlu0 %v562, 96
        %v738 = vpop.permute.xlu0 %737
        %739 = vrot.lane.b32.xlu0 %v567, 96
        %v740 = vpop.permute.xlu0 %739
        %741 = vrot.lane.b32.xlu0 %v572, 96
        %v742 = vpop.permute.xlu0 %741
        %743 = vrot.lane.b32.xlu0 %v577, 96
        %v744 = vpop.permute.xlu0 %743
        %745 = vrot.lane.b32.xlu0 %v582, 96
        %v746 = vpop.permute.xlu0 %745
        %747 = vrot.lane.b32.xlu0 %v587, 96
        %v748 = vpop.permute.xlu0 %747
        %749 = vrot.lane.b32.xlu0 %v592, 96
        %v750 = vpop.permute.xlu0 %749
        %751 = vrot.lane.b32.xlu0 %v597, 96
        %v752 = vpop.permute.xlu0 %751
        %753 = vrot.lane.b32.xlu0 %v602, 96
        %v754 = vpop.permute.xlu0 %753
        %755 = vrot.lane.b32.xlu0 %v607, 96
        %v756 = vpop.permute.xlu0 %755
        %757 = vrot.lane.b32.xlu0 %v612, 96
        %v758 = vpop.permute.xlu0 %757
        %759 = vrot.lane.b32.xlu0 %v617, 96
        %v760 = vpop.permute.xlu0 %759
        %761 = vrot.lane.b32.xlu0 %v622, 96
        %v762 = vpop.permute.xlu0 %761
        %763 = vrot.lane.b32.xlu0 %v627, 96
        %v764 = vpop.permute.xlu0 %763
        %765 = vrot.lane.b32.xlu0 %v632, 96
        %v766 = vpop.permute.xlu0 %765
        %767 = vrot.lane.b32.xlu0 %v637, 96
        %v768 = vpop.permute.xlu0 %767
        %801 = vxpose.xlu0.b32.start [1/16] %v706, 128
        %802 = vxpose.xlu0.b32.cont [2/16] %v708, 128
        %803 = vxpose.xlu0.b32.cont [3/16] %v710, 128
        %804 = vxpose.xlu0.b32.cont [4/16] %v712, 128
        %805 = vxpose.xlu0.b32.cont [5/16] %v714, 128
        %806 = vxpose.xlu0.b32.cont [6/16] %v716, 128
        %807 = vxpose.xlu0.b32.cont [7/16] %v718, 128
        %808 = vxpose.xlu0.b32.cont [8/16] %v720, 128
        %809 = vxpose.xlu0.b32.cont [9/16] %v722, 128
        %810 = vxpose.xlu0.b32.cont [10/16] %v724, 128
        %811 = vxpose.xlu0.b32.cont [11/16] %v726, 128
        %812 = vxpose.xlu0.b32.cont [12/16] %v728, 128
        %813 = vxpose.xlu0.b32.cont [13/16] %v730, 128
        %814 = vxpose.xlu0.b32.cont [14/16] %v732, 128
        %815 = vxpose.xlu0.b32.cont [15/16] %v734, 128
        %816 = vxpose.xlu0.b32.end [16/16] %v736, 128
        %v817 = vpop.trf.xlu0
        %v818 = vpop.trf.xlu0
        %v819 = vpop.trf.xlu0
        %v820 = vpop.trf.xlu0
        %v821 = vpop.trf.xlu0
        %v822 = vpop.trf.xlu0
        %v823 = vpop.trf.xlu0
        %v824 = vpop.trf.xlu0
        %v825 = vpop.trf.xlu0
        %v826 = vpop.trf.xlu0
        %v827 = vpop.trf.xlu0
        %v828 = vpop.trf.xlu0
        %v829 = vpop.trf.xlu0
        %v830 = vpop.trf.xlu0
        %v831 = vpop.trf.xlu0
        %v832 = vpop.trf.xlu0
        %833 = vxpose.xlu0.b32.start [1/16] %v738, 128
        %834 = vxpose.xlu0.b32.cont [2/16] %v740, 128
        %835 = vxpose.xlu0.b32.cont [3/16] %v742, 128
        %836 = vxpose.xlu0.b32.cont [4/16] %v744, 128
        %837 = vxpose.xlu0.b32.cont [5/16] %v746, 128
        %838 = vxpose.xlu0.b32.cont [6/16] %v748, 128
        %839 = vxpose.xlu0.b32.cont [7/16] %v750, 128
        %840 = vxpose.xlu0.b32.cont [8/16] %v752, 128
        %841 = vxpose.xlu0.b32.cont [9/16] %v754, 128
        %842 = vxpose.xlu0.b32.cont [10/16] %v756, 128
        %843 = vxpose.xlu0.b32.cont [11/16] %v758, 128
        %844 = vxpose.xlu0.b32.cont [12/16] %v760, 128
        %845 = vxpose.xlu0.b32.cont [13/16] %v762, 128
        %846 = vxpose.xlu0.b32.cont [14/16] %v764, 128
        %847 = vxpose.xlu0.b32.cont [15/16] %v766, 128
        %848 = vxpose.xlu0.b32.end [16/16] %v768, 128
        %v849 = vpop.trf.xlu0
        %v850 = vpop.trf.xlu0
        %v851 = vpop.trf.xlu0
        %v852 = vpop.trf.xlu0
        %v853 = vpop.trf.xlu0
        %v854 = vpop.trf.xlu0
        %v855 = vpop.trf.xlu0
        %v856 = vpop.trf.xlu0
        %v857 = vpop.trf.xlu0
        %v858 = vpop.trf.xlu0
        %v859 = vpop.trf.xlu0
        %v860 = vpop.trf.xlu0
        %v861 = vpop.trf.xlu0
        %v862 = vpop.trf.xlu0
        %v863 = vpop.trf.xlu0
        %v864 = vpop.trf.xlu0
        %865 = vst [vmem:[%s231] sm:$0xff] %v817
        %866 = vst [vmem:[%s231 + $0x8] sm:$0xff] %v849
        %867 = vst [vmem:[%s231 + $0x10] sm:$0xff] %v818
        %868 = vst [vmem:[%s231 + $0x18] sm:$0xff] %v850
        %869 = vst [vmem:[%s231 + $0x20] sm:$0xff] %v819
        %870 = vst [vmem:[%s231 + $0x28] sm:$0xff] %v851
        %871 = vst [vmem:[%s231 + $0x30] sm:$0xff] %v820
        %872 = vst [vmem:[%s231 + $0x38] sm:$0xff] %v852
        %873 = vrot.lane.b32.xlu0 %v482, 64
        %v874 = vpop.permute.xlu0 %873
        %875 = vrot.lane.b32.xlu0 %v487, 64
        %v876 = vpop.permute.xlu0 %875
        %877 = vrot.lane.b32.xlu0 %v492, 64
        %v878 = vpop.permute.xlu0 %877
        %879 = vrot.lane.b32.xlu0 %v497, 64
        %v880 = vpop.permute.xlu0 %879
        %881 = vrot.lane.b32.xlu0 %v502, 64
        %v882 = vpop.permute.xlu0 %881
        %883 = vrot.lane.b32.xlu0 %v507, 64
        %v884 = vpop.permute.xlu0 %883
        %885 = vrot.lane.b32.xlu0 %v512, 64
        %v886 = vpop.permute.xlu0 %885
        %887 = vrot.lane.b32.xlu0 %v517, 64
        %v888 = vpop.permute.xlu0 %887
        %889 = vrot.lane.b32.xlu0 %v522, 64
        %v890 = vpop.permute.xlu0 %889
        %891 = vrot.lane.b32.xlu0 %v527, 64
        %v892 = vpop.permute.xlu0 %891
        %893 = vrot.lane.b32.xlu0 %v532, 64
        %v894 = vpop.permute.xlu0 %893
        %895 = vrot.lane.b32.xlu0 %v537, 64
        %v896 = vpop.permute.xlu0 %895
        %897 = vrot.lane.b32.xlu0 %v542, 64
        %v898 = vpop.permute.xlu0 %897
        %899 = vrot.lane.b32.xlu0 %v547, 64
        %v900 = vpop.permute.xlu0 %899
        %901 = vrot.lane.b32.xlu0 %v552, 64
        %v902 = vpop.permute.xlu0 %901
        %903 = vrot.lane.b32.xlu0 %v557, 64
        %v904 = vpop.permute.xlu0 %903
        %905 = vrot.lane.b32.xlu0 %v562, 64
        %v906 = vpop.permute.xlu0 %905
        %907 = vrot.lane.b32.xlu0 %v567, 64
        %v908 = vpop.permute.xlu0 %907
        %909 = vrot.lane.b32.xlu0 %v572, 64
        %v910 = vpop.permute.xlu0 %909
        %911 = vrot.lane.b32.xlu0 %v577, 64
        %v912 = vpop.permute.xlu0 %911
        %913 = vrot.lane.b32.xlu0 %v582, 64
        %v914 = vpop.permute.xlu0 %913
        %915 = vrot.lane.b32.xlu0 %v587, 64
        %v916 = vpop.permute.xlu0 %915
        %917 = vrot.lane.b32.xlu0 %v592, 64
        %v918 = vpop.permute.xlu0 %917
        %919 = vrot.lane.b32.xlu0 %v597, 64
        %v920 = vpop.permute.xlu0 %919
        %921 = vrot.lane.b32.xlu0 %v602, 64
        %v922 = vpop.permute.xlu0 %921
        %923 = vrot.lane.b32.xlu0 %v607, 64
        %v924 = vpop.permute.xlu0 %923
        %925 = vrot.lane.b32.xlu0 %v612, 64
        %v926 = vpop.permute.xlu0 %925
        %927 = vrot.lane.b32.xlu0 %v617, 64
        %v928 = vpop.permute.xlu0 %927
        %929 = vrot.lane.b32.xlu0 %v622, 64
        %v930 = vpop.permute.xlu0 %929
        %931 = vrot.lane.b32.xlu0 %v627, 64
        %v932 = vpop.permute.xlu0 %931
        %933 = vrot.lane.b32.xlu0 %v632, 64
        %v934 = vpop.permute.xlu0 %933
        %935 = vrot.lane.b32.xlu0 %v637, 64
        %v936 = vpop.permute.xlu0 %935
        %969 = vst.msk [vmem:[%s272] sm:$0xff] %vm640, %v874
        %970 = vst.msk [vmem:[%s272 + $0x8] sm:$0xff] %vm640, %v876
        %971 = vst.msk [vmem:[%s272 + $0x10] sm:$0xff] %vm640, %v878
        %972 = vst.msk [vmem:[%s272 + $0x18] sm:$0xff] %vm640, %v880
        %973 = vst.msk [vmem:[%s272 + $0x20] sm:$0xff] %vm640, %v882
        %974 = vst.msk [vmem:[%s272 + $0x28] sm:$0xff] %vm640, %v884
        %975 = vst.msk [vmem:[%s272 + $0x30] sm:$0xff] %vm640, %v886
        %976 = vst.msk [vmem:[%s272 + $0x38] sm:$0xff] %vm640, %v888
        %977 = vst.msk [vmem:[%s272 + $0x40] sm:$0xff] %vm640, %v890
        %978 = vst.msk [vmem:[%s272 + $0x48] sm:$0xff] %vm640, %v892
        %979 = vst.msk [vmem:[%s272 + $0x50] sm:$0xff] %vm640, %v894
        %980 = vst.msk [vmem:[%s272 + $0x58] sm:$0xff] %vm640, %v896
        %981 = vst.msk [vmem:[%s272 + $0x60] sm:$0xff] %vm640, %v898
        %982 = vst.msk [vmem:[%s272 + $0x68] sm:$0xff] %vm640, %v900
        %983 = vst.msk [vmem:[%s272 + $0x70] sm:$0xff] %vm640, %v902
        %984 = vst.msk [vmem:[%s272 + $0x78] sm:$0xff] %vm640, %v904
        %985 = vst.msk [vmem:[%s272 + $0x80] sm:$0xff] %vm640, %v906
        %986 = vst.msk [vmem:[%s272 + $0x88] sm:$0xff] %vm640, %v908
        %987 = vst.msk [vmem:[%s272 + $0x90] sm:$0xff] %vm640, %v910
        %988 = vst.msk [vmem:[%s272 + $0x98] sm:$0xff] %vm640, %v912
        %989 = vst.msk [vmem:[%s272 + $0xa0] sm:$0xff] %vm640, %v914
        %990 = vst.msk [vmem:[%s272 + $0xa8] sm:$0xff] %vm640, %v916
        %991 = vst.msk [vmem:[%s272 + $0xb0] sm:$0xff] %vm640, %v918
        %992 = vst.msk [vmem:[%s272 + $0xb8] sm:$0xff] %vm640, %v920
        %993 = vst.msk [vmem:[%s272 + $0xc0] sm:$0xff] %vm640, %v922
        %994 = vst.msk [vmem:[%s272 + $0xc8] sm:$0xff] %vm640, %v924
        %995 = vst.msk [vmem:[%s272 + $0xd0] sm:$0xff] %vm640, %v926
        %996 = vst.msk [vmem:[%s272 + $0xd8] sm:$0xff] %vm640, %v928
        %997 = vst.msk [vmem:[%s272 + $0xe0] sm:$0xff] %vm640, %v930
        %998 = vst.msk [vmem:[%s272 + $0xe8] sm:$0xff] %vm640, %v932
        %999 = vst.msk [vmem:[%s272 + $0xf0] sm:$0xff] %vm640, %v934
        %1000 = vst.msk [vmem:[%s272 + $0xf8] sm:$0xff] %vm640, %v936
        %s1001 = smul.u32 32, %s24
        %p1002 = scmp.lt.s32.totalorder %s23, 1
        %s1003 = scalar_select %p1002, %s23, 1
        %p1004 = scmp.lt.s32.totalorder %s1001, 31
        %s1005 = scalar_select %p1004, %s1001, 31
        %s1006 = smul.addr %s1003, 32
        %s1007 = sadd.s32 %s1005, %s1006
        %s1008 = smul.addr %s1007, 8
        %s1009 = scalar_lea.vmem %s2, %s1008
        %s1010 = sand.u32 %s118, 1
        %s1011 = scalar_lea.sflag [#allocation3], %s1010
        %s1012 = sand.u32 %s118, 1
        %s1013 = smul.addr %s1012, 64
        %s1014 = scalar_lea.vmem [#allocation2], %s1013
        %s1015 = smul.u32 32, %s24
        %p1016 = scmp.lt.s32.totalorder %s23, 1
        %s1017 = scalar_select %p1016, %s23, 1
        %p1018 = scmp.lt.s32.totalorder %s1015, 31
        %s1019 = scalar_select %p1018, %s1015, 31
        %s1020 = smul.addr %s1017, 32
        %s1021 = sadd.s32 %s1019, %s1020
        %s1022 = smul.addr %s1021, 8
        %s1023 = scalar_lea.vmem %s4, %s1022
        // Predicated region
        $region29: #{tpu_custom_call.1} parent=27 // pred_check
          %p1024 = pneg %p100
        $region30: #{tpu_custom_call.1} parent=27 // pred_check_branch
          %1026 = sbr.rel (%p1024) target = $region32
        $region31: #{tpu_custom_call.1} parent=27 // pred_region
          %s1027 = smul.u32 32, %s24
        $region32: #{tpu_custom_call.1} parent=27 // pred_fallthru
          _
        // Predicated region
        $region33: #{tpu_custom_call.1} parent=27 // pred_check
          %p1028 = pneg %p128
        $region34: #{tpu_custom_call.1} parent=27 // pred_check_branch
          %1030 = sbr.rel (%p1028) target = $region36
        $region35: #{tpu_custom_call.1} parent=27 // pred_region
          %s1031 = smul.u32 2, %s24
          %s1033 = ssub.s32 1024, 1024
          %1034 = vsyncadd %s1011, %s1033
          %s1035 = smul.addr %s23, 8
          %s1036 = sadd.s32 %s1031, %s1035
          %s1037 = smul.addr %s1036, 128
          %s1038 = scalar_lea.hbm %s3, %s1037
          %s1039 = sshll.u32 %s1014, 4
          %s1040 = int_to_ptr.vmem [resolvable:$true] %s1039
          %1045 = dma.vmem_to_hbm [thread:$0]  %s1040, 1024, %s1038, %s1011, 256, 256, 16
        $region36: #{tpu_custom_call.1} parent=27 // pred_fallthru
          _
        // Predicated region
        $region37: #{tpu_custom_call.1} parent=27 // pred_check
          %p1046 = pneg %p156
        $region38: #{tpu_custom_call.1} parent=27 // pred_check_branch
          %1048 = sbr.rel (%p1046) target = $region40
        $region39: #{tpu_custom_call.1} parent=27 // pred_region
          %s1049 = smul.u32 32, %s24
        $region40: #{tpu_custom_call.1} parent=27 // pred_fallthru
          _
      $region28: #{tpu_custom_call.1} parent=5 // pred_fallthru
        _
      %p1050 = scmp.le.s32.totalorder 2, %s14
      // Predicated region
      $region41: #{tpu_custom_call.1} parent=5 // pred_check
        %p1051 = pneg %p1050
      $region42: #{tpu_custom_call.1} parent=5 // pred_check_branch
        %1053 = sbr.rel (%p1051) target = $region44
      $region43: #{tpu_custom_call.1} parent=5 // pred_region
        %s1054 = ssub.s32 %s14, 2
        // Predicated region
        $region45: #{tpu_custom_call.1} parent=43 // pred_check
          %p1055 = pneg %p106
        $region46: #{tpu_custom_call.1} parent=43 // pred_check_branch
          %1057 = sbr.rel (%p1055) target = $region48
        $region47: #{tpu_custom_call.1} parent=43 // pred_region
          %s1058 = smul.u32 32, %s26
          %p1059 = scmp.lt.s32.totalorder %s25, 1
          %s1060 = scalar_select %p1059, %s25, 1
          %p1061 = scmp.lt.s32.totalorder %s1058, 31
          %s1062 = scalar_select %p1061, %s1058, 31
          %s1063 = smul.addr %s1060, 32
          %s1064 = sadd.s32 %s1062, %s1063
          %s1065 = smul.addr %s1064, 8
          %s1066 = scalar_lea.vmem %s2, %s1065
        $region48: #{tpu_custom_call.1} parent=43 // pred_fallthru
          _
        // Predicated region
        $region49: #{tpu_custom_call.1} parent=43 // pred_check
          %p1067 = pneg %p134
        $region50: #{tpu_custom_call.1} parent=43 // pred_check_branch
          %1069 = sbr.rel (%p1067) target = $region52
        $region51: #{tpu_custom_call.1} parent=43 // pred_region
          %s1070 = sand.u32 %s119, 1
          %s1071 = scalar_lea.sflag [#allocation3], %s1070
          %s1072 = sand.u32 %s119, 1
          %s1073 = smul.addr %s1072, 64
          %s1074 = scalar_lea.vmem [#allocation2], %s1073
          %1075 = dma.done %s1071, 1024
        $region52: #{tpu_custom_call.1} parent=43 // pred_fallthru
          _
        // Predicated region
        $region53: #{tpu_custom_call.1} parent=43 // pred_check
          %p1076 = pneg %p162
        $region54: #{tpu_custom_call.1} parent=43 // pred_check_branch
          %1078 = sbr.rel (%p1076) target = $region56
        $region55: #{tpu_custom_call.1} parent=43 // pred_region
          %s1079 = smul.u32 32, %s26
          %p1080 = scmp.lt.s32.totalorder %s25, 1
          %s1081 = scalar_select %p1080, %s25, 1
          %p1082 = scmp.lt.s32.totalorder %s1079, 31
          %s1083 = scalar_select %p1082, %s1079, 31
          %s1084 = smul.addr %s1081, 32
          %s1085 = sadd.s32 %s1083, %s1084
          %s1086 = smul.addr %s1085, 8
          %s1087 = scalar_lea.vmem %s4, %s1086
        $region56: #{tpu_custom_call.1} parent=43 // pred_fallthru
          _
      $region44: #{tpu_custom_call.1} parent=5 // pred_fallthru
        _
    $region6: #{tpu_custom_call.1} parent=1 // loop_footer
      %s18 = sadd.s32 1, %s14
    $region7: #{tpu_custom_call.1} parent=1 // loop_footer_branch
      %13 = sbr.rel target = $region3
    $region8: #{tpu_custom_call.1} parent=1 // loop_exit
      _
    %1088 = vsyncpa [#allocation3], 1
    %s1089 = scalar_lea.sflag [#allocation3], 1
    %1090 = vsyncpa %s1089, 1

</llo_original>
